<compile_context>
chip_gen: v7x
topology: tpu7x:2x2x1
jax: 0.10.0
libtpu: 0.0.40
codegen_flags: <defaults>
</compile_context>

<pallas_src>
import functools
import math

import jax
import jax.numpy as jnp
from jax import lax
from jax.experimental import pallas as pl
from jax.experimental.pallas import tpu as pltpu


# ---------------------------------------------------------------------------
# Hardware / sizing helpers
# ---------------------------------------------------------------------------
def _vmem_capacity_bytes():
    """Physical VMEM of the current TPU generation (best effort)."""
    try:
        info = pltpu.get_tpu_info()
        cap = getattr(info, "vmem_capacity_bytes", None)
        if cap:
            return int(cap)
    except Exception:
        pass
    try:
        kind = jax.devices()[0].device_kind.lower()
        if "v7" in kind or "7x" in kind:
            return 64 * 1024 * 1024
    except Exception:
        pass
    return 128 * 1024 * 1024


def _has_bf16_eup():
    """bf16 transcendentals exist on v6e/v7x (not v5e)."""
    try:
        kind = jax.devices()[0].device_kind.lower()
    except Exception:
        return False
    return ("v6" in kind) or ("v7" in kind) or ("7x" in kind)


def _pick_tile(dim, max_tile):
    """Largest power-of-two tile <= max_tile that evenly divides `dim`
    (and is a multiple of 8), else the full dim."""
    if dim <= max_tile:
        return dim
    t = max_tile
    while t >= 8:
        if dim % t == 0:
            return t
        t //= 2
    return dim


def _pick_group(bh, max_g=8):
    """Number of heads processed per grid step (must divide BH)."""
    g = max(1, min(bh, max_g))
    while bh % g:
        g -= 1
    return g


def _ensure_split(bh, sq, tq, g):
    """v7x has 2 TensorCores: make sure at least one 'parallel' grid axis can
    actually be split (extent >= 2) when possible."""
    if bh >= 2 and (sq // tq) < 2 and bh // g < 2:
        g = _pick_group(bh, max_g=max(1, bh // 2))
    return g


def _attn_vmem_bytes(G, tq, Sk, Dk, Dv, in_item, attn_item):
    """Double-buffered block working set of the attn-returning path + f32 score
    intermediates + margin."""
    q_blk = G * tq * Dk * in_item
    k_blk = G * Sk * Dk * in_item
    v_blk = G * Sk * Dv * in_item
    ctx_blk = G * tq * Dv * in_item
    attn_blk = G * tq * Sk * attn_item
    scores_f32 = G * tq * Sk * 4
    return 2 * (q_blk + k_blk + v_blk + ctx_blk + attn_blk) + 3 * scores_f32 + (2 << 20)


def _flash_vmem_bytes(G, tq, tk, Dk, Dv, in_item, kv_bufs):
    q_blk = 2 * G * tq * Dk * in_item
    k_blk = kv_bufs * G * tk * Dk * in_item
    v_blk = kv_bufs * G * tk * Dv * in_item
    ctx_blk = 2 * G * tq * Dv * in_item
    scratch = G * tq * (Dv + 2) * 4
    s_f32 = 3 * G * tq * tk * 4
    return q_blk + k_blk + v_blk + ctx_blk + scratch + s_f32 + (2 << 20)


def _select_tiles_attn(BH, Sq, Sk, Dk, Dv, in_item, attn_item, budget):
    tq = _pick_tile(Sq, 512 if budget > (96 << 20) else 256)
    G = _ensure_split(BH, Sq, tq, _pick_group(BH, max_g=8))
    while _attn_vmem_bytes(G, tq, Sk, Dk, Dv, in_item, attn_item) > budget:
        if G > 2:
            G = _pick_group(BH, max_g=max(2, G // 2))
        elif tq > 128 and _pick_tile(Sq, tq // 2) < tq:
            tq = _pick_tile(Sq, tq // 2)
        elif G > 1:
            G = 1
        elif tq > 8 and _pick_tile(Sq, tq // 2) < tq:
            tq = _pick_tile(Sq, tq // 2)
        else:
            break
    return G, tq


def _select_tiles_flash(BH, Sq, Sk, Dk, Dv, in_item, budget, kv_bufs):
    tq = _pick_tile(Sq, 256)
    tk = _pick_tile(Sk, 1024 if budget > (96 << 20) else 512)
    G = _ensure_split(BH, Sq, tq, _pick_group(BH, max_g=8))
    while _flash_vmem_bytes(G, tq, tk, Dk, Dv, in_item, kv_bufs) > budget:
        if tk > 128 and _pick_tile(Sk, tk // 2) < tk:
            tk = _pick_tile(Sk, tk // 2)
            continue
        if tq > 128 and _pick_tile(Sq, tq // 2) < tq:
            tq = _pick_tile(Sq, tq // 2)
            continue
        if G > 1:
            G = _pick_group(BH, max_g=max(1, G // 2))
            continue
        break
    return G, tq, tk


def _block_spec(shape, index_map, buffers=2):
    """BlockSpec with optional deeper pipelining (guarded fallback)."""
    if buffers and buffers > 2:
        try:
            return pl.BlockSpec(shape, index_map, pipeline_mode=pl.Buffered(buffers))
        except Exception:
            pass
    return pl.BlockSpec(shape, index_map)


# ---------------------------------------------------------------------------
# Kernel 1: returns (context, attn) — softmax over the full Sk axis per step.
# ---------------------------------------------------------------------------
def _sdpa_attn_kernel(q_ref, k_ref, v_ref, ctx_ref, attn_ref, *, scale, mxu_dtype):
    # Blocks: q [G, tq, Dk], k [G, Sk, Dk], v [G, Sk, Dv]
    q = q_ref[...] * scale                      # fold 1/sqrt(d_k) into Q (Sq*Dk ops)
    k = k_ref[...]
    if mxu_dtype is not None:                   # bf16 MXU operands, f32 accumulate
        q = q.astype(mxu_dtype)
        k = k.astype(mxu_dtype)

    # scores[g, q, s] = sum_d q[g, q, d] * k[g, s, d]   (no K^T materialized)
    scores = lax.dot_general(
        q, k,
        dimension_numbers=(((2,), (2,)), ((0,), (0,))),
        preferred_element_type=jnp.float32)     # [G, tq, Sk], f32

    # Numerically-stable softmax in f32 (matches torch.Softmax).
    m = jnp.max(scores, axis=-1, keepdims=True)
    e = jnp.exp(scores - m)
    denom = jnp.sum(e, axis=-1, keepdims=True)
    attn = e * pl.reciprocal(denom, approx=False)   # exact: attn is a user output

    v = v_ref[...]
    # context = attn @ V   (batched over heads)
    ctx = lax.dot_general(
        attn.astype(v.dtype), v,
        dimension_numbers=(((2,), (1,)), ((0,), (0,))),
        preferred_element_type=jnp.float32)     # [G, tq, Dv]

    ctx_ref[...] = ctx.astype(ctx_ref.dtype)
    attn_ref[...] = attn.astype(attn_ref.dtype)


# ---------------------------------------------------------------------------
# Kernel 2: context only — flash-style online softmax, never builds [Sq, Sk].
# ---------------------------------------------------------------------------
def _flash_ctx_kernel(q_ref, k_ref, v_ref, ctx_ref, m_sc, l_sc, acc_sc, *,
                      scale, mxu_dtype, exp_dtype, lane_dense, G):
    ki = pl.program_id(2)

    @pl.when(ki == 0)
    def _():
        m_sc[...] = jnp.full(m_sc.shape, -jnp.inf, m_sc.dtype)
        l_sc[...] = jnp.zeros(l_sc.shape, l_sc.dtype)
        acc_sc[...] = jnp.zeros(acc_sc.shape, acc_sc.dtype)

    q = q_ref[...] * scale                      # [G, tq, Dk]
    k = k_ref[...]                              # [G, tk, Dk]
    if mxu_dtype is not None:
        q = q.astype(mxu_dtype)
        k = k.astype(mxu_dtype)

    s = lax.dot_general(
        q, k,
        dimension_numbers=(((2,), (2,)), ((0,), (0,))),
        preferred_element_type=jnp.float32)     # [G, tq, tk]

    m_prev = m_sc[...]
    m_new = jnp.maximum(m_prev, jnp.max(s, axis=-1, keepdims=True))
    alpha = jnp.exp(m_prev - m_new)
    if exp_dtype is not None:                   # bf16 exp on chips with bf16 EUP
        p = jnp.exp((s - m_new).astype(exp_dtype))
    else:
        p = jnp.exp(s - m_new)

    v = v_ref[...]                              # [G, tk, Dv]
    l_sc[...] = alpha * l_sc[...] + jnp.sum(p.astype(jnp.float32), axis=-1,
                                            keepdims=True)
    acc_sc[...] = alpha * acc_sc[...] + lax.dot_general(
        p.astype(v.dtype), v,
        dimension_numbers=(((2,), (1,)), ((0,), (0,))),
        preferred_element_type=jnp.float32)
    m_sc[...] = m_new

    @pl.when(ki == pl.num_programs(2) - 1)
    def _():
        # Exact reciprocal: runs once per (h, qi) tile on a [G, tq, 1] tensor.
        out = acc_sc[...] * pl.reciprocal(l_sc[...], approx=False)
        if lane_dense:
            # Present a lane-dense [tq, G*Dv] tile (unmasked, wide stores).
            dense = jnp.concatenate([out[g] for g in range(G)], axis=-1)
            ctx_ref[...] = dense[None].astype(ctx_ref.dtype)
        else:
            ctx_ref[...] = out.astype(ctx_ref.dtype)


# ---------------------------------------------------------------------------
# Wrappers
# ---------------------------------------------------------------------------
def _attention_with_probs(q, k, v, scale, G, tq, mxu_dtype, attn_dtype, vmem_limit):
    BH, Sq, Dk = q.shape
    Sk = k.shape[1]
    Dv = v.shape[2]

    kernel = functools.partial(_sdpa_attn_kernel, scale=scale, mxu_dtype=mxu_dtype)
    ctx, attn = pl.pallas_call(
        kernel,
        out_shape=(
            jax.ShapeDtypeStruct((BH, Sq, Dv), q.dtype),
            jax.ShapeDtypeStruct((BH, Sq, Sk), attn_dtype),
        ),
        grid_spec=pltpu.PrefetchScalarGridSpec(
            num_scalar_prefetch=0,
            grid=(BH // G, Sq // tq),
            in_specs=[
                pl.BlockSpec((G, tq, Dk), lambda h, qi: (h, qi, 0)),
                pl.BlockSpec((G, Sk, Dk), lambda h, qi: (h, 0, 0)),
                pl.BlockSpec((G, Sk, Dv), lambda h, qi: (h, 0, 0)),
            ],
            out_specs=[
                pl.BlockSpec((G, tq, Dv), lambda h, qi: (h, qi, 0)),
                pl.BlockSpec((G, tq, Sk), lambda h, qi: (h, qi, 0)),
            ],
        ),
        compiler_params=pltpu.CompilerParams(
            dimension_semantics=("parallel", "parallel"),
            vmem_limit_bytes=vmem_limit),
    )(q, k, v)
    return ctx, attn


def _flash_context(q, k, v, scale, G, tq, tk, mxu_dtype, exp_dtype, lane_dense,
                   kv_buffers, vmem_limit):
    BH, Sq, Dk = q.shape
    Sk = k.shape[1]
    Dv = v.shape[2]

    kernel = functools.partial(_flash_ctx_kernel, scale=scale, mxu_dtype=mxu_dtype,
                               exp_dtype=exp_dtype, lane_dense=lane_dense, G=G)

    if lane_dense:
        out_shape = jax.ShapeDtypeStruct((BH // G, Sq, G * Dv), q.dtype)
        out_spec = pl.BlockSpec((1, tq, G * Dv), lambda h, qi, ki: (h, qi, 0))
    else:
        out_shape = jax.ShapeDtypeStruct((BH, Sq, Dv), q.dtype)
        out_spec = pl.BlockSpec((G, tq, Dv), lambda h, qi, ki: (h, qi, 0))

    ctx = pl.pallas_call(
        kernel,
        out_shape=out_shape,
        grid_spec=pltpu.PrefetchScalarGridSpec(
            num_scalar_prefetch=0,
            grid=(BH // G, Sq // tq, Sk // tk),
            in_specs=[
                pl.BlockSpec((G, tq, Dk), lambda h, qi, ki: (h, qi, 0)),
                _block_spec((G, tk, Dk), lambda h, qi, ki: (h, ki, 0), kv_buffers),
                _block_spec((G, tk, Dv), lambda h, qi, ki: (h, ki, 0), kv_buffers),
            ],
            out_specs=out_spec,
            scratch_shapes=[
                pltpu.VMEM((G, tq, 1), jnp.float32),   # running max
                pltpu.VMEM((G, tq, 1), jnp.float32),   # running denom
                pltpu.VMEM((G, tq, Dv), jnp.float32),  # output accumulator
            ],
        ),
        compiler_params=pltpu.CompilerParams(
            dimension_semantics=("parallel", "parallel", "arbitrary"),
            vmem_limit_bytes=vmem_limit),
    )(q, k, v)

    if lane_dense:
        # Layout plumbing back to per-head [BH, Sq, Dv].
        ctx = (ctx.reshape(BH // G, Sq, G, Dv)
                  .transpose(0, 2, 1, 3)
                  .reshape(BH, Sq, Dv))
    return ctx


def scaled_dot_product_attention(Q, K, V, d_k, *, return_attn=True,
                                 precision="fast", attn_dtype=None):
    """Q, K: [..., Sq/Sk, d_k]; V: [..., Sk, d_v].

    return_attn=True  -> (context, attn)   (matches the PyTorch module)
    return_attn=False -> (context, None)   (flash-style, no [Sq, Sk] materialized)
    precision="exact" -> full f32 math (torch parity);
    precision="fast"  -> bf16 MXU operands for f32 inputs (+bf16 exp on v6e/v7x
                         flash path at small head_dim); f32 accumulation kept.
    attn_dtype        -> dtype of the returned attention matrix (default: input
                         dtype; pass jnp.bfloat16 to halve the HBM writeback).
    """
    *lead, Sq, Dk = Q.shape
    Sk = K.shape[-2]
    Dv = V.shape[-1]
    BH = int(math.prod(lead)) if lead else 1

    q = Q.reshape(BH, Sq, Dk)
    k = K.reshape(BH, Sk, Dk)
    v = V.reshape(BH, Sk, Dv)

    scale = 1.0 / math.sqrt(d_k)
    fast = (precision != "exact")
    mxu_dtype = jnp.bfloat16 if (fast and q.dtype == jnp.float32) else None
    attn_dt = jnp.dtype(attn_dtype) if attn_dtype is not None else jnp.dtype(q.dtype)
    in_item = jnp.dtype(q.dtype).itemsize

    # Generation-aware VMEM budget (85% of physical, leaves headroom on v7x).
    budget = int(_vmem_capacity_bytes() * 0.85)

    if return_attn:
        G, tq = _select_tiles_attn(BH, Sq, Sk, Dk, Dv, in_item, attn_dt.itemsize,
                                   budget)
        wset = _attn_vmem_bytes(G, tq, Sk, Dk, Dv, in_item, attn_dt.itemsize)
        vmem_limit = max(16 << 20, min(budget, wset))
        ctx, attn = _attention_with_probs(q, k, v, scale, G, tq, mxu_dtype,
                                          attn_dt, vmem_limit)
        return ctx.reshape(*lead, Sq, Dv), attn.reshape(*lead, Sq, Sk)

    # Context-only flash path.
    G, tq, tk = _select_tiles_flash(BH, Sq, Sk, Dk, Dv, in_item, budget, kv_bufs=3)
    kv_buffers = 3 if (Dk <= 64 and Sk // tk >= 3) else 2
    exp_dtype = jnp.bfloat16 if (fast and Dk <= 64 and _has_bf16_eup()) else None
    lane_dense = (Dv < 128 and G > 1)
    wset = _flash_vmem_bytes(G, tq, tk, Dk, Dv, in_item, kv_buffers)
    vmem_limit = max(16 << 20, min(budget, wset))
    ctx = _flash_context(q, k, v, scale, G, tq, tk, mxu_dtype, exp_dtype,
                         lane_dense, kv_buffers, vmem_limit)
    return ctx.reshape(*lead, Sq, Dv), None


if __name__ == "__main__":
    # Small shapes consistent with the module: batch=2, heads=2, seq=8, d_k=32
    B, H, S, D = 2, 2, 8, 32
    key = jax.random.PRNGKey(0)
    kq, kk, kv = jax.random.split(key, 3)
    Q = jax.random.normal(kq, (B, H, S, D), dtype=jnp.float32)
    K = jax.random.normal(kk, (B, H, S, D), dtype=jnp.float32)
    V = jax.random.normal(kv, (B, H, S, D), dtype=jnp.float32)

    # Pure-JAX reference
    scores_ref = jnp.einsum("bhqd,bhkd->bhqk", Q, K) / jnp.sqrt(jnp.float32(D))
    attn_ref = jax.nn.softmax(scores_ref, axis=-1)
    ctx_ref = jnp.einsum("bhqk,bhkd->bhqd", attn_ref, V)

    # 1) exact path: strict torch parity (f32 everywhere)
    ctx_x, attn_x = scaled_dot_product_attention(Q, K, V, d_k=D, precision="exact")
    jax.block_until_ready((ctx_x, attn_x))
    assert jnp.allclose(attn_x, attn_ref, atol=1e-5), "exact attn mismatch"
    assert jnp.allclose(ctx_x, ctx_ref, atol=1e-5), "exact context mismatch"

    # 2) default fast path: bf16 MXU operands, f32 accumulation -> looser tolerance
    ctx_f, attn_f = scaled_dot_product_attention(Q, K, V, d_k=D)
    jax.block_until_ready((ctx_f, attn_f))
    assert jnp.allclose(attn_f, attn_ref, atol=5e-2, rtol=5e-2), "fast attn mismatch"
    assert jnp.allclose(ctx_f, ctx_ref, atol=5e-2, rtol=5e-2), "fast context mismatch"

    # 3) context-only flash path (online softmax, lane-dense ctx output, fast math)
    ctx_fl, _ = scaled_dot_product_attention(Q, K, V, d_k=D, return_attn=False)
    jax.block_until_ready(ctx_fl)
    assert jnp.allclose(ctx_fl, ctx_ref, atol=5e-2, rtol=5e-2), "flash context mismatch"

    # 3b) flash path in exact precision (exact reciprocal) -> tight tolerance
    ctx_fle, _ = scaled_dot_product_attention(Q, K, V, d_k=D, return_attn=False,
                                              precision="exact")
    jax.block_until_ready(ctx_fle)
    assert jnp.allclose(ctx_fle, ctx_ref, atol=1e-5), "flash exact context mismatch"

    print("KERNEL_OK")
</pallas_src>

<mosaic_0001>
module attributes {stable_mosaic.version = 11 : i64} {
  func.func @_sdpa_attn_kernel(%arg0: i32, %arg1: i32, %arg2: memref<2x8x32xf32, #tpu.memory_space<vmem>>, %arg3: memref<2x8x32xf32, #tpu.memory_space<vmem>>, %arg4: memref<2x8x32xf32, #tpu.memory_space<vmem>>, %arg5: memref<2x8x32xf32, #tpu.memory_space<vmem>>, %arg6: memref<2x8x8xf32, #tpu.memory_space<vmem>>) attributes {dimension_semantics = [#tpu.dimension_semantics<parallel>, #tpu.dimension_semantics<parallel>], iteration_bounds = array<i64: 2, 1>, scalar_prefetch = 0 : i64, scratch_operands = 0 : i64, tpu.core_type = #tpu.core_type<tc>, window_params = [{transform_indices = @transform_0, window_bounds = array<i64: 2, 8, 32>}, {transform_indices = @transform_1, window_bounds = array<i64: 2, 8, 32>}, {transform_indices = @transform_2, window_bounds = array<i64: 2, 8, 32>}, {transform_indices = @transform_3, window_bounds = array<i64: 2, 8, 32>}, {transform_indices = @transform_4, window_bounds = array<i64: 2, 8, 8>}]} {
    %c0 = arith.constant 0 : index
    %c0_0 = arith.constant 0 : index
    %c0_1 = arith.constant 0 : index
    %0 = vector.load %arg2[%c0, %c0_0, %c0_1] : memref<2x8x32xf32, #tpu.memory_space<vmem>>, vector<2x8x32xf32>
    %cst = arith.constant 0.176776692 : f32
    %1 = vector.broadcast %cst : f32 to vector<2x8x32xf32>
    %2 = arith.mulf %0, %1 : vector<2x8x32xf32>
    %c0_2 = arith.constant 0 : index
    %c0_3 = arith.constant 0 : index
    %c0_4 = arith.constant 0 : index
    %3 = vector.load %arg3[%c0_2, %c0_3, %c0_4] : memref<2x8x32xf32, #tpu.memory_space<vmem>>, vector<2x8x32xf32>
    %cst_5 = arith.constant dense<0.000000e+00> : vector<2x8x8xf32>
    %4 = tpu.matmul %2, %3, %cst_5 {dimension_numbers = #tpu.dot_dimension_numbers<[2], [2], [1], [1], [0, 0, 0, 1, 1, 1], [0], [0]>} : vector<2x8x32xf32>, vector<2x8x32xf32>, vector<2x8x8xf32> -> vector<2x8x8xf32>
    %cst_6 = arith.constant dense<0xFF800000> : vector<2x8xf32>
    %5 = vector.multi_reduction <maximumf>, %4, %cst_6 [2] : vector<2x8x8xf32> to vector<2x8xf32>
    %6 = vector.shape_cast %5 : vector<2x8xf32> to vector<2x8x1xf32>
    %7 = vector.broadcast %6 : vector<2x8x1xf32> to vector<2x8x8xf32>
    %8 = arith.subf %4, %7 : vector<2x8x8xf32>
    %9 = math.exp %8 : vector<2x8x8xf32>
    %cst_7 = arith.constant dense<0.000000e+00> : vector<2x8xf32>
    %10 = vector.multi_reduction <add>, %9, %cst_7 [2] : vector<2x8x8xf32> to vector<2x8xf32>
    %11 = vector.shape_cast %10 : vector<2x8xf32> to vector<2x8x1xf32>
    %12 = tpu.reciprocal %11 : vector<2x8x1xf32> -> vector<2x8x1xf32>
    %13 = vector.broadcast %12 : vector<2x8x1xf32> to vector<2x8x8xf32>
    %14 = arith.mulf %9, %13 : vector<2x8x8xf32>
    %c0_8 = arith.constant 0 : index
    %c0_9 = arith.constant 0 : index
    %c0_10 = arith.constant 0 : index
    %15 = vector.load %arg4[%c0_8, %c0_9, %c0_10] : memref<2x8x32xf32, #tpu.memory_space<vmem>>, vector<2x8x32xf32>
    %cst_11 = arith.constant dense<0.000000e+00> : vector<2x8x32xf32>
    %16 = tpu.matmul %14, %15, %cst_11 {dimension_numbers = #tpu.dot_dimension_numbers<[2], [1], [1], [2], [0, 0, 0, 1, 1, 2], [0], [0]>} : vector<2x8x8xf32>, vector<2x8x32xf32>, vector<2x8x32xf32> -> vector<2x8x32xf32>
    %c0_12 = arith.constant 0 : index
    %c0_13 = arith.constant 0 : index
    %c0_14 = arith.constant 0 : index
    %17 = vector.load %arg5[%c0_12, %c0_13, %c0_14] : memref<2x8x32xf32, #tpu.memory_space<vmem>>, vector<2x8x32xf32>
    tpu.vector_store %arg5[%c0_12, %c0_13, %c0_14], %16 {strides = array<i32>} : memref<2x8x32xf32, #tpu.memory_space<vmem>>, vector<2x8x32xf32>,
    %c0_15 = arith.constant 0 : index
    %c0_16 = arith.constant 0 : index
    %c0_17 = arith.constant 0 : index
    %18 = vector.load %arg6[%c0_15, %c0_16, %c0_17] : memref<2x8x8xf32, #tpu.memory_space<vmem>>, vector<2x8x8xf32>
    tpu.vector_store %arg6[%c0_15, %c0_16, %c0_17], %14 {strides = array<i32>} : memref<2x8x8xf32, #tpu.memory_space<vmem>>, vector<2x8x8xf32>,
    return
  }
  func.func @transform_0(%arg0: i32, %arg1: i32) -> (i32, i32, i32) {
    %c0_i32 = arith.constant 0 : i32
    %c0_i32_0 = arith.constant 0 : i32
    return %arg0, %arg1, %c0_i32 : i32, i32, i32
  }
  func.func @transform_1(%arg0: i32, %arg1: i32) -> (i32, i32, i32) {
    %c0_i32 = arith.constant 0 : i32
    %c0_i32_0 = arith.constant 0 : i32
    %c0_i32_1 = arith.constant 0 : i32
    return %arg0, %c0_i32, %c0_i32_0 : i32, i32, i32
  }
  func.func @transform_2(%arg0: i32, %arg1: i32) -> (i32, i32, i32) {
    %c0_i32 = arith.constant 0 : i32
    %c0_i32_0 = arith.constant 0 : i32
    %c0_i32_1 = arith.constant 0 : i32
    return %arg0, %c0_i32, %c0_i32_0 : i32, i32, i32
  }
  func.func @transform_3(%arg0: i32, %arg1: i32) -> (i32, i32, i32) {
    %c0_i32 = arith.constant 0 : i32
    %c0_i32_0 = arith.constant 0 : i32
    return %arg0, %arg1, %c0_i32 : i32, i32, i32
  }
  func.func @transform_4(%arg0: i32, %arg1: i32) -> (i32, i32, i32) {
    %c0_i32 = arith.constant 0 : i32
    %c0_i32_0 = arith.constant 0 : i32
    return %arg0, %arg1, %c0_i32 : i32, i32, i32
  }
}

</mosaic_0001>

<llo_original>
// kernel: tpu_custom_call.1
$region0: #{tpu_custom_call.1}
  #allocation0 [shape = 'u32[]', space=smem, size = 0x4, offset = 0x4, fixed_abs, tag = 'smem constant byte address 0x4 - core index']
  #allocation1 [shape = 'u32[144,128]{1,0:T(1,128)}', space=vmem, size = 0x12000, scoped, tag = 'internal scratch']
  %s0 = inlined_call_operand.hbm [shape: f32[4,8,32], index: 0, kind: input, shape index: {}]
  %s1 = inlined_call_operand.hbm [shape: f32[4,8,32], index: 1, kind: input, shape index: {}]
  %s2 = inlined_call_operand.hbm [shape: f32[4,8,32], index: 2, kind: input, shape index: {}]
  %s3 = inlined_call_operand.hbm [shape: f32[4,8,32], index: 3, kind: output, shape index: {0}]
  %s4 = inlined_call_operand.hbm [shape: f32[4,8,8], index: 4, kind: output, shape index: {1}]
  %5 = xla_tuple %s3, %s4
  %s6 = sld [smem:[#allocation0]]
  $region65: #{tpu_custom_call.1} parent=0
    _
  %s8 = ssub.s32 1, %s6
  %s9 = scalar_select 0, %s8, %s6
  $region1: #{tpu_custom_call.1} parent=0
    #allocation2 [shape = 'u8[16384]{0}', space=vmem, size = 0x4000, scoped, tag = 'input window, operand 0']
    #allocation3 [shape = 's32[2]{0}', space=sflag, size = 0x8, scoped, tag = 'scoped memory for tpu_custom_call.1']
    #allocation4 [shape = 's32[2]{0}', space=sflag, size = 0x8, scoped, tag = 'scoped memory for tpu_custom_call.1']
    #allocation5 [shape = 'u8[16384]{0}', space=vmem, size = 0x4000, scoped, tag = 'input window, operand 1']
    #allocation6 [shape = 's32[2]{0}', space=sflag, size = 0x8, scoped, tag = 'scoped memory for tpu_custom_call.1']
    #allocation7 [shape = 'u8[16384]{0}', space=vmem, size = 0x4000, scoped, tag = 'input window, operand 2']
    #allocation8 [shape = 'u8[16384]{0}', space=vmem, size = 0x4000, scoped, tag = 'output window, operand 0']
    #allocation9 [shape = 'u8[16384]{0}', space=vmem, size = 0x4000, scoped, tag = 'output window, operand 1']
    #allocation10 [shape = 's32[2]{0}', space=sflag, size = 0x8, scoped, tag = 'scoped memory for tpu_custom_call.1']
    %10 = vsyncpa [#allocation3], 0
    %s11 = scalar_lea.sflag [#allocation3], 1
    %12 = vsyncpa %s11, 0
    %13 = vsyncpa [#allocation6], 0
    %s14 = scalar_lea.sflag [#allocation6], 1
    %15 = vsyncpa %s14, 0
    %16 = vsyncpa [#allocation4], 0
    %s17 = scalar_lea.sflag [#allocation4], 1
    %18 = vsyncpa %s17, 0
    %19 = vsyncpa [#allocation10], 0
    %s20 = scalar_lea.sflag [#allocation10], 1
    %21 = vsyncpa %s20, 0
    loop: start=0, step=1, limit=4
    $region2: #{tpu_custom_call.1} parent=1 // loop_pre_header
      _
    $region3: #{tpu_custom_call.1} parent=1 // loop_header
      %s23 = sphi 0, %s27
      %p24 = scmp.ge.s32.totalorder %s23, 4
      %s30 = sphi 0, %s42
      %s31 = sphi 0, %s38
      %s32 = sphi 0, %s30
      %s33 = sphi 0, %s31
      %s34 = sphi 0, %s32
      %s35 = sphi 0, %s33
      %s47 = sphi 0, %s49
      %s50 = sphi 0, %s47
      %s51 = sphi 0, %s50
      %s67 = sphi 0, %s51
      %s73 = sphi 0, %s75
      %s76 = sphi 0, %s73
      %s77 = sphi 0, %s76
      %s93 = sphi 0, %s77
      %s99 = sphi 0, %s101
      %s102 = sphi 0, %s99
      %s103 = sphi 0, %s102
      %s119 = sphi 0, %s103
      %s127 = sphi 0, %s129
      %s130 = sphi 0, %s127
      %s131 = sphi 0, %s130
      %s147 = sphi 0, %s131
      %s155 = sphi 0, %s157
      %s158 = sphi 0, %s155
      %s159 = sphi 0, %s158
      %s175 = sphi 0, %s159
    $region4: #{tpu_custom_call.1} parent=1 // loop_header_branch
      %26 = sbr.rel (%p24) target = $region8
    $region5: #{tpu_custom_call.1} parent=1 // loop_body
      %s28 = ssub.s32 %s23, 1
      %s29 = ssub.s32 %s23, 2
      %s36 = sadd.s32 1, %s31
      %p37 = scmp.ge.s32.totalorder %s36, 1
      %s38 = scalar_select %p37, 0, %s36
      %s39 = sadd.s32 1, %s30
      %s40 = scalar_select %p37, %s39, %s30
      %p41 = scmp.ge.s32.totalorder %s40, 2
      %s42 = scalar_select %p41, 0, %s40
      %s43 = ssub.s32 %s30, %s42
      %s44 = ssub.s32 %s31, %s38
      %s45 = sor.u32 %s43, %s44
      %p46 = scmp.eq.s32.totalorder %s45, 0
      %s48 = sadd.s32 %s47, 1
      %s49 = scalar_select %p46, %s47, %s48
      %p52 = pneg %p46
      %p53 = scmp.eq.s32.totalorder %s23, 1
      %p54 = por %p52, %p53
      %p55 = scmp.ne.s32.totalorder %s47, %s50
      %p56 = scmp.eq.s32.totalorder %s23, 0
      %p57 = por %p55, %p56
      %p58 = scmp.ne.s32.totalorder %s47, %s50
      %p59 = scmp.eq.s32.totalorder %s28, 1
      %p60 = por %p58, %p59
      %p61 = scmp.ne.s32.totalorder %s50, %s51
      %p62 = scmp.eq.s32.totalorder %s28, 0
      %p63 = por %p61, %p62
      %p64 = scmp.ne.s32.totalorder %s50, %s51
      %p65 = scmp.eq.s32.totalorder %s29, 1
      %p66 = por %p64, %p65
      %p68 = scmp.ne.s32.totalorder %s51, %s67
      %p69 = scmp.eq.s32.totalorder %s29, 0
      %p70 = por %p68, %p69
      %s71 = ssub.s32 %s30, %s42
      %p72 = scmp.eq.s32.totalorder %s71, 0
      %s74 = sadd.s32 %s73, 1
      %s75 = scalar_select %p72, %s73, %s74
      %p78 = pneg %p72
      %p79 = scmp.eq.s32.totalorder %s23, 1
      %p80 = por %p78, %p79
      %p81 = scmp.ne.s32.totalorder %s73, %s76
      %p82 = scmp.eq.s32.totalorder %s23, 0
      %p83 = por %p81, %p82
      %p84 = scmp.ne.s32.totalorder %s73, %s76
      %p85 = scmp.eq.s32.totalorder %s28, 1
      %p86 = por %p84, %p85
      %p87 = scmp.ne.s32.totalorder %s76, %s77
      %p88 = scmp.eq.s32.totalorder %s28, 0
      %p89 = por %p87, %p88
      %p90 = scmp.ne.s32.totalorder %s76, %s77
      %p91 = scmp.eq.s32.totalorder %s29, 1
      %p92 = por %p90, %p91
      %p94 = scmp.ne.s32.totalorder %s77, %s93
      %p95 = scmp.eq.s32.totalorder %s29, 0
      %p96 = por %p94, %p95
      %s97 = ssub.s32 %s30, %s42
      %p98 = scmp.eq.s32.totalorder %s97, 0
      %s100 = sadd.s32 %s99, 1
      %s101 = scalar_select %p98, %s99, %s100
      %p104 = pneg %p98
      %p105 = scmp.eq.s32.totalorder %s23, 1
      %p106 = por %p104, %p105
      %p107 = scmp.ne.s32.totalorder %s99, %s102
      %p108 = scmp.eq.s32.totalorder %s23, 0
      %p109 = por %p107, %p108
      %p110 = scmp.ne.s32.totalorder %s99, %s102
      %p111 = scmp.eq.s32.totalorder %s28, 1
      %p112 = por %p110, %p111
      %p113 = scmp.ne.s32.totalorder %s102, %s103
      %p114 = scmp.eq.s32.totalorder %s28, 0
      %p115 = por %p113, %p114
      %p116 = scmp.ne.s32.totalorder %s102, %s103
      %p117 = scmp.eq.s32.totalorder %s29, 1
      %p118 = por %p116, %p117
      %p120 = scmp.ne.s32.totalorder %s103, %s119
      %p121 = scmp.eq.s32.totalorder %s29, 0
      %p122 = por %p120, %p121
      %s123 = ssub.s32 %s30, %s42
      %s124 = ssub.s32 %s31, %s38
      %s125 = sor.u32 %s123, %s124
      %p126 = scmp.eq.s32.totalorder %s125, 0
      %s128 = sadd.s32 %s127, 1
      %s129 = scalar_select %p126, %s127, %s128
      %p132 = pneg %p126
      %p133 = scmp.eq.s32.totalorder %s23, 1
      %p134 = por %p132, %p133
      %p135 = scmp.ne.s32.totalorder %s127, %s130
      %p136 = scmp.eq.s32.totalorder %s23, 0
      %p137 = por %p135, %p136
      %p138 = scmp.ne.s32.totalorder %s127, %s130
      %p139 = scmp.eq.s32.totalorder %s28, 1
      %p140 = por %p138, %p139
      %p141 = scmp.ne.s32.totalorder %s130, %s131
      %p142 = scmp.eq.s32.totalorder %s28, 0
      %p143 = por %p141, %p142
      %p144 = scmp.ne.s32.totalorder %s130, %s131
      %p145 = scmp.eq.s32.totalorder %s29, 1
      %p146 = por %p144, %p145
      %p148 = scmp.ne.s32.totalorder %s131, %s147
      %p149 = scmp.eq.s32.totalorder %s29, 0
      %p150 = por %p148, %p149
      %s151 = ssub.s32 %s30, %s42
      %s152 = ssub.s32 %s31, %s38
      %s153 = sor.u32 %s151, %s152
      %p154 = scmp.eq.s32.totalorder %s153, 0
      %s156 = sadd.s32 %s155, 1
      %s157 = scalar_select %p154, %s155, %s156
      %p160 = pneg %p154
      %p161 = scmp.eq.s32.totalorder %s23, 1
      %p162 = por %p160, %p161
      %p163 = scmp.ne.s32.totalorder %s155, %s158
      %p164 = scmp.eq.s32.totalorder %s23, 0
      %p165 = por %p163, %p164
      %p166 = scmp.ne.s32.totalorder %s155, %s158
      %p167 = scmp.eq.s32.totalorder %s28, 1
      %p168 = por %p166, %p167
      %p169 = scmp.ne.s32.totalorder %s158, %s159
      %p170 = scmp.eq.s32.totalorder %s28, 0
      %p171 = por %p169, %p170
      %p172 = scmp.ne.s32.totalorder %s158, %s159
      %p173 = scmp.eq.s32.totalorder %s29, 1
      %p174 = por %p172, %p173
      %p176 = scmp.ne.s32.totalorder %s159, %s175
      %p177 = scmp.eq.s32.totalorder %s29, 0
      %p178 = por %p176, %p177
      %p179 = scmp.le.s32.totalorder 1, %s23
      %p180 = scmp.lt.s32.totalorder %s23, 3
      %p181 = pnand %p179, %p180
      %p182 = pneg %p181
      // Predicated region
      $region9: #{tpu_custom_call.1} parent=5 // pred_check
        _
      $region10: #{tpu_custom_call.1} parent=5 // pred_check_branch
        %184 = sbr.rel (%p181) target = $region12
      $region11: #{tpu_custom_call.1} parent=5 // pred_region
        %s185 = ssub.s32 %s23, 1
      $region12: #{tpu_custom_call.1} parent=5 // pred_fallthru
        _
      %p186 = scmp.lt.s32.totalorder %s23, 2
      // Predicated region
      $region13: #{tpu_custom_call.1} parent=5 // pred_check
        %p187 = pneg %p186
      $region14: #{tpu_custom_call.1} parent=5 // pred_check_branch
        %189 = sbr.rel (%p187) target = $region16
      $region15: #{tpu_custom_call.1} parent=5 // pred_region
        // Predicated region
        $region17: #{tpu_custom_call.1} parent=15 // pred_check
          %p190 = pneg %p57
        $region18: #{tpu_custom_call.1} parent=15 // pred_check_branch
          %192 = sbr.rel (%p190) target = $region20
        $region19: #{tpu_custom_call.1} parent=15 // pred_region
          %s193 = sand.u32 %s47, 1
          %s194 = scalar_lea.sflag [#allocation3], %s193
          %s195 = sand.u32 %s47, 1
          %s196 = smul.addr %s195, 16
          %s197 = scalar_lea.vmem [#allocation2], %s196
          %s198 = smul.u32 2, %s30
          %s200 = ssub.s32 256, 256
          %201 = vsyncadd %s194, %s200
          %s202 = sadd.s32 %s31, %s198
          %s203 = smul.addr %s202, 128
          %s204 = scalar_lea.hbm %s0, %s203
          %s205 = sshll.u32 %s197, 4
          %s206 = int_to_ptr.vmem [resolvable:$true] %s205
          %211 = dma.hbm_to_vmem [thread:$0]  %s204, 256, %s206, %s194, 128, 128, 8
        $region20: #{tpu_custom_call.1} parent=15 // pred_fallthru
          _
        // Predicated region
        $region21: #{tpu_custom_call.1} parent=15 // pred_check
          %p212 = pneg %p83
        $region22: #{tpu_custom_call.1} parent=15 // pred_check_branch
          %214 = sbr.rel (%p212) target = $region24
        $region23: #{tpu_custom_call.1} parent=15 // pred_region
          %s215 = sand.u32 %s23, 1
          %s216 = scalar_lea.sflag [#allocation6], %s215
          %s217 = sand.u32 %s73, 1
          %s218 = smul.addr %s217, 16
          %s219 = scalar_lea.vmem [#allocation5], %s218
          %s220 = smul.u32 2, %s30
          %s222 = ssub.s32 256, 256
          %223 = vsyncadd %s216, %s222
          %s224 = smul.addr %s220, 128
          %s225 = scalar_lea.hbm %s1, %s224
          %s226 = sshll.u32 %s219, 4
          %s227 = int_to_ptr.vmem [resolvable:$true] %s226
          %232 = dma.hbm_to_vmem [thread:$0]  %s225, 256, %s227, %s216, 128, 128, 8
        $region24: #{tpu_custom_call.1} parent=15 // pred_fallthru
          _
        // Predicated region
        $region25: #{tpu_custom_call.1} parent=15 // pred_check
          %p233 = pneg %p109
        $region26: #{tpu_custom_call.1} parent=15 // pred_check_branch
          %235 = sbr.rel (%p233) target = $region28
        $region27: #{tpu_custom_call.1} parent=15 // pred_region
          %s236 = sand.u32 %s23, 1
          %s237 = scalar_lea.sflag [#allocation6], %s236
          %s238 = sand.u32 %s99, 1
          %s239 = smul.addr %s238, 16
          %s240 = scalar_lea.vmem [#allocation7], %s239
          %s241 = smul.u32 2, %s30
          %s243 = ssub.s32 256, 256
          %244 = vsyncadd %s237, %s243
          %s245 = smul.addr %s241, 128
          %s246 = scalar_lea.hbm %s2, %s245
          %s247 = sshll.u32 %s240, 4
          %s248 = int_to_ptr.vmem [resolvable:$true] %s247
          %253 = dma.hbm_to_vmem [thread:$0]  %s246, 256, %s248, %s237, 128, 128, 8
        $region28: #{tpu_custom_call.1} parent=15 // pred_fallthru
          _
      $region16: #{tpu_custom_call.1} parent=5 // pred_fallthru
        _
      %p254 = scmp.le.s32.totalorder 1, %s23
      %p255 = scmp.lt.s32.totalorder %s23, 3
      %p256 = pnand %p254, %p255
      %p257 = pneg %p256
      // Predicated region
      $region29: #{tpu_custom_call.1} parent=5 // pred_check
        _
      $region30: #{tpu_custom_call.1} parent=5 // pred_check_branch
        %259 = sbr.rel (%p256) target = $region32
      $region31: #{tpu_custom_call.1} parent=5 // pred_region
        %s260 = ssub.s32 %s23, 1
        %s261 = sand.u32 %s50, 1
        %s262 = scalar_lea.sflag [#allocation3], %s261
        %s263 = sand.u32 %s50, 1
        %s264 = smul.addr %s263, 16
        %s265 = scalar_lea.vmem [#allocation2], %s264
        // Predicated region
        $region33: #{tpu_custom_call.1} parent=31 // pred_check
          %p266 = pneg %p63
        $region34: #{tpu_custom_call.1} parent=31 // pred_check_branch
          %268 = sbr.rel (%p266) target = $region36
        $region35: #{tpu_custom_call.1} parent=31 // pred_region
          %269 = dma.done %s262, 256
        $region36: #{tpu_custom_call.1} parent=31 // pred_fallthru
          _
        %s270 = sand.u32 %s28, 1
        %s271 = scalar_lea.sflag [#allocation6], %s270
        %s272 = sand.u32 %s76, 1
        %s273 = smul.addr %s272, 16
        %s274 = scalar_lea.vmem [#allocation5], %s273
        // Predicated region
        $region37: #{tpu_custom_call.1} parent=31 // pred_check
          %p275 = pneg %p89
        $region38: #{tpu_custom_call.1} parent=31 // pred_check_branch
          %277 = sbr.rel (%p275) target = $region40
        $region39: #{tpu_custom_call.1} parent=31 // pred_region
          %278 = dma.done %s271, 256
        $region40: #{tpu_custom_call.1} parent=31 // pred_fallthru
          _
        %s279 = sand.u32 %s28, 1
        %s280 = scalar_lea.sflag [#allocation6], %s279
        %s281 = sand.u32 %s102, 1
        %s282 = smul.addr %s281, 16
        %s283 = scalar_lea.vmem [#allocation7], %s282
        // Predicated region
        $region41: #{tpu_custom_call.1} parent=31 // pred_check
          %p284 = pneg %p115
        $region42: #{tpu_custom_call.1} parent=31 // pred_check_branch
          %286 = sbr.rel (%p284) target = $region44
        $region43: #{tpu_custom_call.1} parent=31 // pred_region
          %287 = dma.done %s280, 256
        $region44: #{tpu_custom_call.1} parent=31 // pred_fallthru
          _
        %s288 = sand.u32 %s50, 1
        %s289 = scalar_lea.sflag [#allocation3], %s288
        %s290 = sand.u32 %s50, 1
        %s291 = smul.addr %s290, 16
        %s292 = scalar_lea.vmem [#allocation2], %s291
        %p293 = pneg %p63
        %p294 = pneg %p60
        %s295 = sand.u32 %s28, 1
        %s296 = scalar_lea.sflag [#allocation6], %s295
        %s297 = sand.u32 %s76, 1
        %s298 = smul.addr %s297, 16
        %s299 = scalar_lea.vmem [#allocation5], %s298
        %p300 = pneg %p89
        %p301 = pneg %p86
        %s302 = sand.u32 %s28, 1
        %s303 = scalar_lea.sflag [#allocation6], %s302
        %s304 = sand.u32 %s102, 1
        %s305 = smul.addr %s304, 16
        %s306 = scalar_lea.vmem [#allocation7], %s305
        %p307 = pneg %p115
        %p308 = pneg %p112
        %p309 = pneg %p143
        %p310 = pneg %p140
        %s311 = sand.u32 %s130, 1
        %s312 = scalar_lea.sflag [#allocation4], %s311
        %s313 = sand.u32 %s130, 1
        %s314 = smul.addr %s313, 16
        %s315 = scalar_lea.vmem [#allocation8], %s314
        %p316 = pneg %p171
        %p317 = pneg %p168
        %s318 = sand.u32 %s158, 1
        %s319 = scalar_lea.sflag [#allocation10], %s318
        %s320 = sand.u32 %s158, 1
        %s321 = smul.addr %s320, 16
        %s322 = scalar_lea.vmem [#allocation9], %s321
        %s323 = smul.u32 2, %s32
        %s324 = smul.u32 2, %s32
        %s325 = smul.u32 2, %s32
        %s326 = smul.u32 2, %s32
        %s327 = smul.u32 2, %s32
        %v328 = vld [vmem:[%s265] sm:$0xff]
        %v329 = vld [vmem:[%s265 + $0x8] sm:$0xff]
        %v330 = vmul.f32 %v328, 0.17677669
        %v331 = vmul.f32 %v329, 0.17677669
        %v332 = vld [vmem:[%s274] sm:$0xff]
        %v333 = vld [vmem:[%s274 + $0x8] sm:$0xff]
        %vm334 = vcmask 261120
        %v336 = vsel %vm334, %v330, 0
        %v339 = vsel %vm334, %v332, 0
        %341 = vmatprep.subr.mxu0 0.0
        %342 = vmatpush1.xpose.msra.mxu0 %v339
        %343 = vmatprep.subr.mxu0 0.0
        %344 = vmatpush1.xpose.msra.mxu0 0.0
        %345 = vmatprep.subr.mxu0 0.0
        %346 = vmatpush1.xpose.msra.mxu0 0.0
        %347 = vmatprep.subr.mxu0 0.0
        %348 = vmatpush1.xpose.msra.mxu0 0.0
        %349 = vmatprep.subr.mxu0 0.0
        %350 = vmatpush1.xpose.msra.mxu0 0.0
        %351 = vmatprep.subr.mxu0 0.0
        %352 = vmatpush1.xpose.msra.mxu0 0.0
        %353 = vmatprep.subr.mxu0 0.0
        %354 = vmatpush1.xpose.msra.mxu0 0.0
        %355 = vmatprep.subr.mxu0 0.0
        %356 = vmatpush1.xpose.msra.mxu0 0.0
        %357 = vmatprep.subr.mxu0 0.0
        %358 = vmatpush1.xpose.msra.mxu0 0.0
        %359 = vmatprep.subr.mxu0 0.0
        %360 = vmatpush1.xpose.msra.mxu0 0.0
        %361 = vmatprep.subr.mxu0 0.0
        %362 = vmatpush1.xpose.msra.mxu0 0.0
        %363 = vmatprep.subr.mxu0 0.0
        %364 = vmatpush1.xpose.msra.mxu0 0.0
        %365 = vmatprep.subr.mxu0 0.0
        %366 = vmatpush1.xpose.msra.mxu0 0.0
        %367 = vmatprep.subr.mxu0 0.0
        %368 = vmatpush1.xpose.msra.mxu0 0.0
        %369 = vmatprep.subr.mxu0 0.0
        %370 = vmatpush1.xpose.msra.mxu0 0.0
        %371 = vmatprep.subr.mxu0 0.0
        %372 = vmatpush1.xpose.msra.mxu0 0.0
        %373 = vmatprep.subr.mxu0 0.0
        %374 = vmatpush1.xpose.msra.mxu0 0.0
        %375 = vmatprep.subr.mxu0 0.0
        %376 = vmatpush1.xpose.msra.mxu0 0.0
        %377 = vmatprep.subr.mxu0 0.0
        %378 = vmatpush1.xpose.msra.mxu0 0.0
        %379 = vmatprep.subr.mxu0 0.0
        %380 = vmatpush1.xpose.msra.mxu0 0.0
        %381 = vmatprep.subr.mxu0 0.0
        %382 = vmatpush1.xpose.msra.mxu0 0.0
        %383 = vmatprep.subr.mxu0 0.0
        %384 = vmatpush1.xpose.msra.mxu0 0.0
        %385 = vmatprep.subr.mxu0 0.0
        %386 = vmatpush1.xpose.msra.mxu0 0.0
        %387 = vmatprep.subr.mxu0 0.0
        %388 = vmatpush1.xpose.msra.mxu0 0.0
        %389 = vmatprep.subr.mxu0 0.0
        %390 = vmatpush1.xpose.msra.mxu0 0.0
        %391 = vmatprep.subr.mxu0 0.0
        %392 = vmatpush1.xpose.msra.mxu0 0.0
        %393 = vmatprep.subr.mxu0 0.0
        %394 = vmatpush1.xpose.msra.mxu0 0.0
        %395 = vmatprep.subr.mxu0 0.0
        %396 = vmatpush1.xpose.msra.mxu0 0.0
        %397 = vmatprep.subr.mxu0 0.0
        %398 = vmatpush1.xpose.msra.mxu0 0.0
        %399 = vmatprep.subr.mxu0 0.0
        %400 = vmatpush1.xpose.msra.mxu0 0.0
        %401 = vmatprep.subr.mxu0 0.0
        %402 = vmatpush1.xpose.msra.mxu0 0.0
        %403 = vmatprep.subr.mxu0 0.0
        %404 = vmatpush1.xpose.msra.mxu0 0.0
        %405 = vmatprep.mubr.f32.mxu0 0.0
        %406 = vmatmul.mubr.f32.gmra.mrb[0].mxu0 %v336
        %v407 = vpop.f32.mrb[0].mxu0
        %v408 = vadd.f32 0.0, %v407
        %v409 = vpop.f32.mrb[0].mxu0
        %410 = vdwg.mxu0
        %v412 = vsel %vm334, %v331, 0
        %v415 = vsel %vm334, %v333, 0
        %417 = vmatprep.subr.mxu0 0.0
        %418 = vmatpush1.xpose.msra.mxu0 %v415
        %419 = vmatprep.subr.mxu0 0.0
        %420 = vmatpush1.xpose.msra.mxu0 0.0
        %421 = vmatprep.subr.mxu0 0.0
        %422 = vmatpush1.xpose.msra.mxu0 0.0
        %423 = vmatprep.subr.mxu0 0.0
        %424 = vmatpush1.xpose.msra.mxu0 0.0
        %425 = vmatprep.subr.mxu0 0.0
        %426 = vmatpush1.xpose.msra.mxu0 0.0
        %427 = vmatprep.subr.mxu0 0.0
        %428 = vmatpush1.xpose.msra.mxu0 0.0
        %429 = vmatprep.subr.mxu0 0.0
        %430 = vmatpush1.xpose.msra.mxu0 0.0
        %431 = vmatprep.subr.mxu0 0.0
        %432 = vmatpush1.xpose.msra.mxu0 0.0
        %433 = vmatprep.subr.mxu0 0.0
        %434 = vmatpush1.xpose.msra.mxu0 0.0
        %435 = vmatprep.subr.mxu0 0.0
        %436 = vmatpush1.xpose.msra.mxu0 0.0
        %437 = vmatprep.subr.mxu0 0.0
        %438 = vmatpush1.xpose.msra.mxu0 0.0
        %439 = vmatprep.subr.mxu0 0.0
        %440 = vmatpush1.xpose.msra.mxu0 0.0
        %441 = vmatprep.subr.mxu0 0.0
        %442 = vmatpush1.xpose.msra.mxu0 0.0
        %443 = vmatprep.subr.mxu0 0.0
        %444 = vmatpush1.xpose.msra.mxu0 0.0
        %445 = vmatprep.subr.mxu0 0.0
        %446 = vmatpush1.xpose.msra.mxu0 0.0
        %447 = vmatprep.subr.mxu0 0.0
        %448 = vmatpush1.xpose.msra.mxu0 0.0
        %449 = vmatprep.subr.mxu0 0.0
        %450 = vmatpush1.xpose.msra.mxu0 0.0
        %451 = vmatprep.subr.mxu0 0.0
        %452 = vmatpush1.xpose.msra.mxu0 0.0
        %453 = vmatprep.subr.mxu0 0.0
        %454 = vmatpush1.xpose.msra.mxu0 0.0
        %455 = vmatprep.subr.mxu0 0.0
        %456 = vmatpush1.xpose.msra.mxu0 0.0
        %457 = vmatprep.subr.mxu0 0.0
        %458 = vmatpush1.xpose.msra.mxu0 0.0
        %459 = vmatprep.subr.mxu0 0.0
        %460 = vmatpush1.xpose.msra.mxu0 0.0
        %461 = vmatprep.subr.mxu0 0.0
        %462 = vmatpush1.xpose.msra.mxu0 0.0
        %463 = vmatprep.subr.mxu0 0.0
        %464 = vmatpush1.xpose.msra.mxu0 0.0
        %465 = vmatprep.subr.mxu0 0.0
        %466 = vmatpush1.xpose.msra.mxu0 0.0
        %467 = vmatprep.subr.mxu0 0.0
        %468 = vmatpush1.xpose.msra.mxu0 0.0
        %469 = vmatprep.subr.mxu0 0.0
        %470 = vmatpush1.xpose.msra.mxu0 0.0
        %471 = vmatprep.subr.mxu0 0.0
        %472 = vmatpush1.xpose.msra.mxu0 0.0
        %473 = vmatprep.subr.mxu0 0.0
        %474 = vmatpush1.xpose.msra.mxu0 0.0
        %475 = vmatprep.subr.mxu0 0.0
        %476 = vmatpush1.xpose.msra.mxu0 0.0
        %477 = vmatprep.subr.mxu0 0.0
        %478 = vmatpush1.xpose.msra.mxu0 0.0
        %479 = vmatprep.subr.mxu0 0.0
        %480 = vmatpush1.xpose.msra.mxu0 0.0
        %481 = vmatprep.mubr.f32.mxu0 0.0
        %482 = vmatmul.mubr.f32.gmra.mrb[0].mxu0 %v412
        %v483 = vpop.f32.mrb[0].mxu0
        %v484 = vadd.f32 0.0, %v483
        %v485 = vpop.f32.mrb[0].mxu0
        %486 = vdwg.mxu0
        %vm487 = vcmask 64512
        %v488 = vsel %vm487, %v408, -inf
        %489 = vmax.xlane.f32.xlu0 %v488
        %v490 = vpop.xlane.xlu0 %489
        %v491 = vsel %vm487, %v484, -inf
        %492 = vmax.xlane.f32.xlu0 %v491
        %v493 = vpop.xlane.xlu0 %492
        %v494 = vsub.f32 %v408, %v490
        %v495 = vsub.f32 %v484, %v493
        %v496 = vmul.f32 %v494, 1.442695
        %v497 = vpow.pop %v496
        %v498 = vmul.f32 %v495, 1.442695
        %v499 = vpow.pop %v498
        %v500 = vsel %vm487, %v497, 0.0
        %501 = vadd.xlane.f32.xlu0 %v500
        %v502 = vpop.xlane.xlu0 %501
        %v503 = vsel %vm487, %v499, 0.0
        %504 = vadd.xlane.f32.xlu0 %v503
        %v505 = vpop.xlane.xlu0 %504
        %v506 = vrcp.pop %v502
        %v507 = vrcp.pop %v505
        %v508 = vmul.f32 %v497, %v506
        %v509 = vmul.f32 %v499, %v507
        %v510 = vld [vmem:[%s283] sm:$0xff]
        %v511 = vld [vmem:[%s283 + $0x8] sm:$0xff]
        %v513 = vsel %vm487, %v508, 0
        %515 = vmatprep.subr.mxu0 0.0
        %516 = vmatpush1.msra.mxu0 %v510
        %517 = vmatprep.subr.mxu0 0.0
        %518 = vmatpush1.msra.mxu0 0.0
        %519 = vmatprep.subr.mxu0 0.0
        %520 = vmatpush1.msra.mxu0 0.0
        %521 = vmatprep.subr.mxu0 0.0
        %522 = vmatpush1.msra.mxu0 0.0
        %523 = vmatprep.subr.mxu0 0.0
        %524 = vmatpush1.msra.mxu0 0.0
        %525 = vmatprep.subr.mxu0 0.0
        %526 = vmatpush1.msra.mxu0 0.0
        %527 = vmatprep.subr.mxu0 0.0
        %528 = vmatpush1.msra.mxu0 0.0
        %529 = vmatprep.subr.mxu0 0.0
        %530 = vmatpush1.msra.mxu0 0.0
        %531 = vmatprep.subr.mxu0 0.0
        %532 = vmatpush1.msra.mxu0 0.0
        %533 = vmatprep.subr.mxu0 0.0
        %534 = vmatpush1.msra.mxu0 0.0
        %535 = vmatprep.subr.mxu0 0.0
        %536 = vmatpush1.msra.mxu0 0.0
        %537 = vmatprep.subr.mxu0 0.0
        %538 = vmatpush1.msra.mxu0 0.0
        %539 = vmatprep.subr.mxu0 0.0
        %540 = vmatpush1.msra.mxu0 0.0
        %541 = vmatprep.subr.mxu0 0.0
        %542 = vmatpush1.msra.mxu0 0.0
        %543 = vmatprep.subr.mxu0 0.0
        %544 = vmatpush1.msra.mxu0 0.0
        %545 = vmatprep.subr.mxu0 0.0
        %546 = vmatpush1.msra.mxu0 0.0
        %547 = vmatprep.subr.mxu0 0.0
        %548 = vmatpush1.msra.mxu0 0.0
        %549 = vmatprep.subr.mxu0 0.0
        %550 = vmatpush1.msra.mxu0 0.0
        %551 = vmatprep.subr.mxu0 0.0
        %552 = vmatpush1.msra.mxu0 0.0
        %553 = vmatprep.subr.mxu0 0.0
        %554 = vmatpush1.msra.mxu0 0.0
        %555 = vmatprep.subr.mxu0 0.0
        %556 = vmatpush1.msra.mxu0 0.0
        %557 = vmatprep.subr.mxu0 0.0
        %558 = vmatpush1.msra.mxu0 0.0
        %559 = vmatprep.subr.mxu0 0.0
        %560 = vmatpush1.msra.mxu0 0.0
        %561 = vmatprep.subr.mxu0 0.0
        %562 = vmatpush1.msra.mxu0 0.0
        %563 = vmatprep.subr.mxu0 0.0
        %564 = vmatpush1.msra.mxu0 0.0
        %565 = vmatprep.subr.mxu0 0.0
        %566 = vmatpush1.msra.mxu0 0.0
        %567 = vmatprep.subr.mxu0 0.0
        %568 = vmatpush1.msra.mxu0 0.0
        %569 = vmatprep.subr.mxu0 0.0
        %570 = vmatpush1.msra.mxu0 0.0
        %571 = vmatprep.subr.mxu0 0.0
        %572 = vmatpush1.msra.mxu0 0.0
        %573 = vmatprep.subr.mxu0 0.0
        %574 = vmatpush1.msra.mxu0 0.0
        %575 = vmatprep.subr.mxu0 0.0
        %576 = vmatpush1.msra.mxu0 0.0
        %577 = vmatprep.subr.mxu0 0.0
        %578 = vmatpush1.msra.mxu0 0.0
        %579 = vmatprep.mubr.f32.mxu0 0.0
        %580 = vmatmul.mubr.f32.gmra.mrb[0].mxu0 %v513
        %v581 = vpop.f32.mrb[0].mxu0
        %v582 = vadd.f32 0.0, %v581
        %v583 = vpop.f32.mrb[0].mxu0
        %584 = vdwg.mxu0
        %v586 = vsel %vm487, %v509, 0
        %588 = vmatprep.subr.mxu0 0.0
        %589 = vmatpush1.msra.mxu0 %v511
        %590 = vmatprep.subr.mxu0 0.0
        %591 = vmatpush1.msra.mxu0 0.0
        %592 = vmatprep.subr.mxu0 0.0
        %593 = vmatpush1.msra.mxu0 0.0
        %594 = vmatprep.subr.mxu0 0.0
        %595 = vmatpush1.msra.mxu0 0.0
        %596 = vmatprep.subr.mxu0 0.0
        %597 = vmatpush1.msra.mxu0 0.0
        %598 = vmatprep.subr.mxu0 0.0
        %599 = vmatpush1.msra.mxu0 0.0
        %600 = vmatprep.subr.mxu0 0.0
        %601 = vmatpush1.msra.mxu0 0.0
        %602 = vmatprep.subr.mxu0 0.0
        %603 = vmatpush1.msra.mxu0 0.0
        %604 = vmatprep.subr.mxu0 0.0
        %605 = vmatpush1.msra.mxu0 0.0
        %606 = vmatprep.subr.mxu0 0.0
        %607 = vmatpush1.msra.mxu0 0.0
        %608 = vmatprep.subr.mxu0 0.0
        %609 = vmatpush1.msra.mxu0 0.0
        %610 = vmatprep.subr.mxu0 0.0
        %611 = vmatpush1.msra.mxu0 0.0
        %612 = vmatprep.subr.mxu0 0.0
        %613 = vmatpush1.msra.mxu0 0.0
        %614 = vmatprep.subr.mxu0 0.0
        %615 = vmatpush1.msra.mxu0 0.0
        %616 = vmatprep.subr.mxu0 0.0
        %617 = vmatpush1.msra.mxu0 0.0
        %618 = vmatprep.subr.mxu0 0.0
        %619 = vmatpush1.msra.mxu0 0.0
        %620 = vmatprep.subr.mxu0 0.0
        %621 = vmatpush1.msra.mxu0 0.0
        %622 = vmatprep.subr.mxu0 0.0
        %623 = vmatpush1.msra.mxu0 0.0
        %624 = vmatprep.subr.mxu0 0.0
        %625 = vmatpush1.msra.mxu0 0.0
        %626 = vmatprep.subr.mxu0 0.0
        %627 = vmatpush1.msra.mxu0 0.0
        %628 = vmatprep.subr.mxu0 0.0
        %629 = vmatpush1.msra.mxu0 0.0
        %630 = vmatprep.subr.mxu0 0.0
        %631 = vmatpush1.msra.mxu0 0.0
        %632 = vmatprep.subr.mxu0 0.0
        %633 = vmatpush1.msra.mxu0 0.0
        %634 = vmatprep.subr.mxu0 0.0
        %635 = vmatpush1.msra.mxu0 0.0
        %636 = vmatprep.subr.mxu0 0.0
        %637 = vmatpush1.msra.mxu0 0.0
        %638 = vmatprep.subr.mxu0 0.0
        %639 = vmatpush1.msra.mxu0 0.0
        %640 = vmatprep.subr.mxu0 0.0
        %641 = vmatpush1.msra.mxu0 0.0
        %642 = vmatprep.subr.mxu0 0.0
        %643 = vmatpush1.msra.mxu0 0.0
        %644 = vmatprep.subr.mxu0 0.0
        %645 = vmatpush1.msra.mxu0 0.0
        %646 = vmatprep.subr.mxu0 0.0
        %647 = vmatpush1.msra.mxu0 0.0
        %648 = vmatprep.subr.mxu0 0.0
        %649 = vmatpush1.msra.mxu0 0.0
        %650 = vmatprep.subr.mxu0 0.0
        %651 = vmatpush1.msra.mxu0 0.0
        %652 = vmatprep.mubr.f32.mxu0 0.0
        %653 = vmatmul.mubr.f32.gmra.mrb[0].mxu0 %v586
        %v654 = vpop.f32.mrb[0].mxu0
        %v655 = vadd.f32 0.0, %v654
        %v656 = vpop.f32.mrb[0].mxu0
        %657 = vdwg.mxu0
        %658 = vst.msk [vmem:[%s315] sm:$0xff] %vm334, %v582
        %659 = vst.msk [vmem:[%s315 + $0x8] sm:$0xff] %vm334, %v655
        %660 = vst.msk [vmem:[%s322] sm:$0xff] %vm487, %v508
        %661 = vst.msk [vmem:[%s322 + $0x8] sm:$0xff] %vm487, %v509
        %s662 = sand.u32 %s130, 1
        %s663 = scalar_lea.sflag [#allocation4], %s662
        %s664 = sand.u32 %s130, 1
        %s665 = smul.addr %s664, 16
        %s666 = scalar_lea.vmem [#allocation8], %s665
        %s667 = sand.u32 %s158, 1
        %s668 = scalar_lea.sflag [#allocation10], %s667
        %s669 = sand.u32 %s158, 1
        %s670 = smul.addr %s669, 16
        %s671 = scalar_lea.vmem [#allocation9], %s670
        // Predicated region
        $region45: #{tpu_custom_call.1} parent=31 // pred_check
          %p672 = pneg %p140
        $region46: #{tpu_custom_call.1} parent=31 // pred_check_branch
          %674 = sbr.rel (%p672) target = $region48
        $region47: #{tpu_custom_call.1} parent=31 // pred_region
          %s675 = smul.u32 2, %s32
          %s677 = ssub.s32 256, 256
          %678 = vsyncadd %s663, %s677
          %s679 = sadd.s32 %s33, %s675
          %s680 = smul.addr %s679, 128
          %s681 = scalar_lea.hbm %s3, %s680
          %s682 = sshll.u32 %s666, 4
          %s683 = int_to_ptr.vmem [resolvable:$true] %s682
          %688 = dma.vmem_to_hbm [thread:$0]  %s683, 256, %s681, %s663, 128, 128, 8
        $region48: #{tpu_custom_call.1} parent=31 // pred_fallthru
          _
        // Predicated region
        $region49: #{tpu_custom_call.1} parent=31 // pred_check
          %p689 = pneg %p168
        $region50: #{tpu_custom_call.1} parent=31 // pred_check_branch
          %691 = sbr.rel (%p689) target = $region52
        $region51: #{tpu_custom_call.1} parent=31 // pred_region
          %s692 = smul.u32 2, %s32
          %s694 = ssub.s32 256, 256
          %695 = vsyncadd %s668, %s694
          %s696 = sadd.s32 %s33, %s692
          %s697 = smul.addr %s696, 128
          %s698 = scalar_lea.hbm %s4, %s697
          %s699 = sshll.u32 %s671, 4
          %s700 = int_to_ptr.vmem [resolvable:$true] %s699
          %705 = dma.vmem_to_hbm [thread:$0]  %s700, 256, %s698, %s668, 128, 128, 8
        $region52: #{tpu_custom_call.1} parent=31 // pred_fallthru
          _
      $region32: #{tpu_custom_call.1} parent=5 // pred_fallthru
        _
      %p706 = scmp.le.s32.totalorder 2, %s23
      // Predicated region
      $region53: #{tpu_custom_call.1} parent=5 // pred_check
        %p707 = pneg %p706
      $region54: #{tpu_custom_call.1} parent=5 // pred_check_branch
        %709 = sbr.rel (%p707) target = $region56
      $region55: #{tpu_custom_call.1} parent=5 // pred_region
        %s710 = ssub.s32 %s23, 2
        // Predicated region
        $region57: #{tpu_custom_call.1} parent=55 // pred_check
          %p711 = pneg %p146
        $region58: #{tpu_custom_call.1} parent=55 // pred_check_branch
          %713 = sbr.rel (%p711) target = $region60
        $region59: #{tpu_custom_call.1} parent=55 // pred_region
          %s714 = sand.u32 %s131, 1
          %s715 = scalar_lea.sflag [#allocation4], %s714
          %s716 = sand.u32 %s131, 1
          %s717 = smul.addr %s716, 16
          %s718 = scalar_lea.vmem [#allocation8], %s717
          %719 = dma.done %s715, 256
        $region60: #{tpu_custom_call.1} parent=55 // pred_fallthru
          _
        // Predicated region
        $region61: #{tpu_custom_call.1} parent=55 // pred_check
          %p720 = pneg %p174
        $region62: #{tpu_custom_call.1} parent=55 // pred_check_branch
          %722 = sbr.rel (%p720) target = $region64
        $region63: #{tpu_custom_call.1} parent=55 // pred_region
          %s723 = sand.u32 %s159, 1
          %s724 = scalar_lea.sflag [#allocation10], %s723
          %s725 = sand.u32 %s159, 1
          %s726 = smul.addr %s725, 16
          %s727 = scalar_lea.vmem [#allocation9], %s726
          %728 = dma.done %s724, 256
        $region64: #{tpu_custom_call.1} parent=55 // pred_fallthru
          _
      $region56: #{tpu_custom_call.1} parent=5 // pred_fallthru
        _
    $region6: #{tpu_custom_call.1} parent=1 // loop_footer
      %s27 = sadd.s32 1, %s23
    $region7: #{tpu_custom_call.1} parent=1 // loop_footer_branch
      %22 = sbr.rel target = $region3
    $region8: #{tpu_custom_call.1} parent=1 // loop_exit
      _
    %729 = vsyncpa [#allocation3], 1
    %s730 = scalar_lea.sflag [#allocation3], 1
    %731 = vsyncpa %s730, 1
    %732 = vsyncpa [#allocation6], 1
    %s733 = scalar_lea.sflag [#allocation6], 1
    %734 = vsyncpa %s733, 1
    %735 = vsyncpa [#allocation4], 1
    %s736 = scalar_lea.sflag [#allocation4], 1
    %737 = vsyncpa %s736, 1
    %738 = vsyncpa [#allocation10], 1
    %s739 = scalar_lea.sflag [#allocation10], 1
    %740 = vsyncpa %s739, 1

</llo_original>
